<compile_context>
chip_gen: v6e
topology: v6e:2x2x1
jax: 0.10.0
libtpu: 0.0.40
codegen_flags: <defaults>
</compile_context>

<pallas_src>
import jax
import jax.numpy as jnp
from jax import lax
from jax.experimental import pallas as pl
from jax.experimental.pallas import tpu as pltpu


def _round_up(x, m):
    return ((x + m - 1) // m) * m


def _vmem_tile_bytes(rows, cols, itemsize):
    """VMEM footprint of one buffer (last dim padded to 128 lanes, 2nd-last to 8 sublanes)."""
    return _round_up(max(rows, 1), 8) * _round_up(max(cols, 1), 128) * itemsize


def _vmem_limit_bytes():
    """Generation-aware scoped-VMEM budget (<=48 MiB on v7x, up to 96 MiB on v5e/v6e)."""
    try:
        cap = int(pltpu.get_tpu_info().vmem_capacity_bytes)
    except Exception:
        cap = 64 * 1024 * 1024  # conservative fallback sized for v7x
    return int(max(16 * 1024 * 1024, min(cap - 16 * 1024 * 1024, 96 * 1024 * 1024)))


# ----------------------------- kernels ---------------------------------------------------


def _bow_fast_kernel(x_ref, w_ref, b_ref, o_ref):
    """Whole problem in one step: o = sigmoid(x @ w + b)."""
    y = jnp.dot(x_ref[...], w_ref[...], preferred_element_type=jnp.float32) + b_ref[...]
    o_ref[...] = (1.0 / (1.0 + jnp.exp(-y))).astype(o_ref.dtype)


def _make_tiled_kernel(V, tk, nk_per, needs_mask):
    """Accumulating matmul over the V grid axis; masks ragged / out-of-range V blocks."""

    def kernel(x_ref, w_ref, o_ref):
        k = pl.program_id(3)

        @pl.when(k == 0)
        def _init():
            o_ref[...] = jnp.zeros_like(o_ref)

        x = x_ref[...]
        w = w_ref[...]
        if needs_mask:  # static: only emitted when some V block overruns the array
            start = (pl.program_id(0) * nk_per + k) * tk
            valid = V - start  # may be <= 0 for a fully out-of-range (clamped) block
            col = lax.broadcasted_iota(jnp.int32, x.shape, 1)
            row = lax.broadcasted_iota(jnp.int32, w.shape, 0)
            x = jnp.where(col < valid, x, jnp.zeros_like(x))
            w = jnp.where(row < valid, w, jnp.zeros_like(w))

        # Accumulate directly into the VMEM-resident f32 output block (no scratch).
        o_ref[...] += jnp.dot(x, w, preferred_element_type=jnp.float32)

    return kernel


# ----------------------------- wrapper ----------------------------------------------------


def bag_of_word_classifier(x, w, b, *, force_tiled=False, block_k=None):
    """sigmoid(x @ w + b).  x: (B, V), w: (V, H), b: (H,) or (1, H) -> (B, H) float32.

    x / w are used in the dtype they arrive in (cast weights to bf16 once, outside the
    per-call path, if you want the bandwidth win); MXU accumulation is always f32.
    """
    B, V = x.shape
    Vw, H = w.shape
    assert Vw == V, (x.shape, w.shape)
    bp = jnp.reshape(b, (1, H)).astype(jnp.float32)

    vmem_limit = _vmem_limit_bytes()
    xi = jnp.dtype(x.dtype).itemsize
    wi = jnp.dtype(w.dtype).itemsize
    itemsize = max(xi, wi)

    cost = pl.CostEstimate(
        flops=2 * B * V * H,
        transcendentals=B * H,
        bytes_accessed=B * V * xi + V * H * wi + H * 4 + B * H * 4,
    )

    # ---------------- fast path: whole problem in one kernel step ------------------------
    fast_bytes = (
        _vmem_tile_bytes(B, V, xi)
        + _vmem_tile_bytes(V, H, wi)
        + _vmem_tile_bytes(1, H, 4)
        + _vmem_tile_bytes(B, H, 4)
    )
    if (not force_tiled) and 2 * fast_bytes <= vmem_limit // 2:
        return pl.pallas_call(
            _bow_fast_kernel,
            out_shape=jax.ShapeDtypeStruct((B, H), jnp.float32),
            grid_spec=pltpu.PrefetchScalarGridSpec(
                num_scalar_prefetch=0,
                grid=(1,),
                in_specs=[
                    pl.BlockSpec((B, V), lambda i: (0, 0)),
                    pl.BlockSpec((V, H), lambda i: (0, 0)),  # W never padded in HBM
                    pl.BlockSpec((1, H), lambda i: (0, 0)),
                ],
                out_specs=pl.BlockSpec((B, H), lambda i: (0, 0)),
            ),
            compiler_params=pltpu.CompilerParams(
                dimension_semantics=("arbitrary",),
                vmem_limit_bytes=vmem_limit,
            ),
            cost_estimate=cost,
        )(x, w, bp)

    # ---------------- tiled path: large V (and/or large B / H) ---------------------------
    tm = B if B <= 256 else 256          # full-dim B block when batch is moderate
    tn = H if H <= 512 else 512          # full-dim H block: W is NOT padded to 128 lanes

    if block_k is not None:
        tk = max(128, _round_up(int(block_k), 128))
    else:
        budget = int(vmem_limit * 0.6)
        tk = 128
        for cand in (4096, 2048, 1024, 512, 256, 128):
            need = (
                2 * (_vmem_tile_bytes(tm, cand, itemsize) + _vmem_tile_bytes(cand, tn, itemsize))
                + 2 * _vmem_tile_bytes(tm, tn, 4)
            )
            if need <= budget:
                tk = cand
                break
    tk = min(tk, _round_up(V, 128))

    nb = -(-B // tm)
    nh = -(-H // tn)
    nk = -(-V // tk)
    # When both "parallel" tile axes collapse to 1, split the V reduction in two so both
    # v7x TensorCores do half the vocab each (a harmless serialized loop on v5e/v6e).
    n_split = 2 if (nb == 1 and nh == 1 and nk >= 2) else 1
    nk_per = -(-nk // n_split)
    needs_mask = (n_split * nk_per * tk) != V

    kernel = _make_tiled_kernel(V, tk, nk_per, needs_mask)

    def _k_block(c, k, nk_per=nk_per, nk=nk):
        # Clamp so a fully out-of-range block (odd nk with a 2-way split) just re-reads the
        # last valid block; the in-kernel mask zeroes its contribution.
        return jnp.minimum(c * nk_per + k, nk - 1)

    partials = pl.pallas_call(
        kernel,
        out_shape=jax.ShapeDtypeStruct((n_split, B, H), jnp.float32),
        grid_spec=pltpu.PrefetchScalarGridSpec(
            num_scalar_prefetch=0,
            grid=(n_split, nb, nh, nk_per),          # reduction (V) axis last
            in_specs=[
                pl.BlockSpec((tm, tk), lambda c, i, j, k: (i, _k_block(c, k))),
                pl.BlockSpec((tk, tn), lambda c, i, j, k: (_k_block(c, k), j)),
            ],
            out_specs=pl.BlockSpec((None, tm, tn), lambda c, i, j, k: (c, i, j)),
        ),
        compiler_params=pltpu.CompilerParams(
            dimension_semantics=("parallel", "parallel", "parallel", "arbitrary"),
            vmem_limit_bytes=vmem_limit,
        ),
        cost_estimate=cost,
    )(x, w)

    acc = partials[0] if n_split == 1 else jnp.sum(partials, axis=0)
    # Tiny (B, H) epilogue; exact sigmoid, applied once after the split partials are merged.
    return jax.nn.sigmoid(acc + bp)


# ----------------------------- self-test ---------------------------------------------------

if __name__ == "__main__":
    def init_and_check(batch, vocab_size, hidden_size, key, **kwargs):
        kx, kw, kb = jax.random.split(key, 3)
        # nn.Linear-style U(-1/sqrt(in), 1/sqrt(in)) init
        bound = 1.0 / float(vocab_size) ** 0.5
        w = jax.random.uniform(kw, (vocab_size, hidden_size), jnp.float32, -bound, bound)
        b = jax.random.uniform(kb, (1, hidden_size), jnp.float32, -bound, bound)
        # bag-of-words style non-negative counts
        x = jax.random.uniform(kx, (batch, vocab_size), jnp.float32, 0.0, 3.0)

        out = bag_of_word_classifier(x, w, b, **kwargs)
        jax.block_until_ready(out)

        ref = jax.nn.sigmoid(x @ w + b)
        assert out.shape == (batch, hidden_size)
        err = float(jnp.max(jnp.abs(out - ref)))
        assert jnp.allclose(out, ref, atol=2e-3, rtol=2e-3), err

    key = jax.random.PRNGKey(0)
    k1, k2, k3 = jax.random.split(key, 3)

    # Module-default shape (vocab_size=128, hidden_size=1, batch=8): single-step fast path.
    init_and_check(8, 128, 1, k1)
    # Larger small case: still fast path, no padding anywhere.
    init_and_check(16, 2304, 3, k2)
    # Force the tiled path: ragged V (not a multiple of 128/tk), multi-step K reduction,
    # 2-way reduction split with a fully out-of-range (masked) final block.
    init_and_check(24, 2341, 3, k3, force_tiled=True, block_k=512)

    print("KERNEL_OK")
</pallas_src>

<mosaic_0001>
module attributes {stable_mosaic.version = 11 : i64} {
  func.func @_bow_fast_kernel(%arg0: i32, %arg1: memref<8x128xf32, #tpu.memory_space<vmem>>, %arg2: memref<128x1xf32, #tpu.memory_space<vmem>>, %arg3: memref<1x1xf32, #tpu.memory_space<vmem>>, %arg4: memref<8x1xf32, #tpu.memory_space<vmem>>) attributes {dimension_semantics = [#tpu.dimension_semantics<arbitrary>], iteration_bounds = array<i64: 1>, scalar_prefetch = 0 : i64, scratch_operands = 0 : i64, tpu.core_type = #tpu.core_type<tc>, window_params = [{pipeline_mode = #tpu.pipeline_mode<synchronous>, transform_indices = @transform_0, window_bounds = array<i64: 8, 128>}, {pipeline_mode = #tpu.pipeline_mode<synchronous>, transform_indices = @transform_1, window_bounds = array<i64: 128, 1>}, {pipeline_mode = #tpu.pipeline_mode<synchronous>, transform_indices = @transform_2, window_bounds = array<i64: 1, 1>}, {pipeline_mode = #tpu.pipeline_mode<synchronous>, transform_indices = @transform_3, window_bounds = array<i64: 8, 1>}]} {
    %c0 = arith.constant 0 : index
    %c0_0 = arith.constant 0 : index
    %0 = vector.load %arg1[%c0, %c0_0] : memref<8x128xf32, #tpu.memory_space<vmem>>, vector<8x128xf32>
    %c0_1 = arith.constant 0 : index
    %c0_2 = arith.constant 0 : index
    %1 = vector.load %arg2[%c0_1, %c0_2] : memref<128x1xf32, #tpu.memory_space<vmem>>, vector<128x1xf32>
    %cst = arith.constant dense<0.000000e+00> : vector<8x1xf32>
    %2 = tpu.matmul %0, %1, %cst {dimension_numbers = #tpu.dot_dimension_numbers<[1], [0], [0], [1], [0, 0, 1, 1], [], []>} : vector<8x128xf32>, vector<128x1xf32>, vector<8x1xf32> -> vector<8x1xf32>
    %c0_3 = arith.constant 0 : index
    %c0_4 = arith.constant 0 : index
    %3 = vector.load %arg3[%c0_3, %c0_4] : memref<1x1xf32, #tpu.memory_space<vmem>>, vector<1x1xf32>
    %4 = vector.broadcast %3 : vector<1x1xf32> to vector<8x1xf32>
    %5 = arith.addf %2, %4 : vector<8x1xf32>
    %cst_5 = arith.constant 0.000000e+00 : f32
    %6 = vector.broadcast %cst_5 : f32 to vector<8x1xf32>
    %7 = arith.subf %6, %5 : vector<8x1xf32>
    %8 = math.exp %7 : vector<8x1xf32>
    %cst_6 = arith.constant 1.000000e+00 : f32
    %9 = vector.broadcast %cst_6 : f32 to vector<8x1xf32>
    %10 = arith.addf %9, %8 : vector<8x1xf32>
    %cst_7 = arith.constant 1.000000e+00 : f32
    %11 = vector.broadcast %cst_7 : f32 to vector<8x1xf32>
    %12 = arith.divf %11, %10 : vector<8x1xf32>
    %c0_8 = arith.constant 0 : index
    %c0_9 = arith.constant 0 : index
    %13 = vector.load %arg4[%c0_8, %c0_9] : memref<8x1xf32, #tpu.memory_space<vmem>>, vector<8x1xf32>
    tpu.vector_store %arg4[%c0_8, %c0_9], %12 {strides = array<i32>} : memref<8x1xf32, #tpu.memory_space<vmem>>, vector<8x1xf32>,
    return
  }
  func.func @transform_0(%arg0: i32) -> (i32, i32) {
    %c0_i32 = arith.constant 0 : i32
    %c0_i32_0 = arith.constant 0 : i32
    %c0_i32_1 = arith.constant 0 : i32
    return %c0_i32, %c0_i32_0 : i32, i32
  }
  func.func @transform_1(%arg0: i32) -> (i32, i32) {
    %c0_i32 = arith.constant 0 : i32
    %c0_i32_0 = arith.constant 0 : i32
    %c0_i32_1 = arith.constant 0 : i32
    return %c0_i32, %c0_i32_0 : i32, i32
  }
  func.func @transform_2(%arg0: i32) -> (i32, i32) {
    %c0_i32 = arith.constant 0 : i32
    %c0_i32_0 = arith.constant 0 : i32
    %c0_i32_1 = arith.constant 0 : i32
    return %c0_i32, %c0_i32_0 : i32, i32
  }
  func.func @transform_3(%arg0: i32) -> (i32, i32) {
    %c0_i32 = arith.constant 0 : i32
    %c0_i32_0 = arith.constant 0 : i32
    %c0_i32_1 = arith.constant 0 : i32
    return %c0_i32, %c0_i32_0 : i32, i32
  }
}

</mosaic_0001>

<llo_original>
// kernel: tpu_custom_call.1
$region0: #{tpu_custom_call.1}
  #allocation0 [shape = 'u32[]', space=smem, size = 0x4, offset = 0x4, fixed_abs, tag = 'smem constant byte address 0x4 - core index']
  #allocation1 [shape = 'u32[144,128]{1,0:T(1,128)}', space=vmem, size = 0x12000, scoped, tag = 'internal scratch']
  #allocation2 [shape = 'f32[1,1]{1,0:T(1,128)S(1)}', space=vmem, size = 0x200, scoped, tag = 'scoped memory for tpu_custom_call.1']
  %s0 = inlined_call_operand.vmem [shape: f32[8,128], index: 0, kind: input, shape index: {}]
  %s1 = inlined_call_operand.vmem [shape: f32[128,1], index: 1, kind: input, shape index: {}]
  %s2 = inlined_call_operand.<no memory space> [shape: f32[1,1], index: 2, kind: input, shape index: {}]
  %s3 = inlined_call_operand.vmem [shape: f32[8,1], index: 3, kind: output, shape index: {}]
  %s4 = sld [smem:[#allocation0]]
  $region22: #{tpu_custom_call.1} parent=0
    _
  %s6 = ssub.s32 1, %s4
  %s7 = scalar_select 0, %s6, %s4
  %v8 = vstv %s2
  %9 = vst [vmem:[#allocation2] sm:$0x1] %v8
  // Predicated region
  $region2: #{tpu_custom_call.1} parent=0 // pred_check
    _
  $region3: #{tpu_custom_call.1} parent=0 // pred_check_branch
    %11 = sbr.rel (0) target = $region5
  $region4: #{tpu_custom_call.1} parent=0 // pred_region
    _
  $region5: #{tpu_custom_call.1} parent=0 // pred_fallthru
    _
  // Predicated region
  $region6: #{tpu_custom_call.1} parent=0 // pred_check
    _
  $region7: #{tpu_custom_call.1} parent=0 // pred_check_branch
    %13 = sbr.rel (0) target = $region9
  $region8: #{tpu_custom_call.1} parent=0 // pred_region
    _
  $region9: #{tpu_custom_call.1} parent=0 // pred_fallthru
    _
  // Predicated region
  $region10: #{tpu_custom_call.1} parent=0 // pred_check
    _
  $region11: #{tpu_custom_call.1} parent=0 // pred_check_branch
    %15 = sbr.rel (0) target = $region13
  $region12: #{tpu_custom_call.1} parent=0 // pred_region
    _
  $region13: #{tpu_custom_call.1} parent=0 // pred_fallthru
    _
  %v16 = vld [vmem:[%s0] sm:$0xff]
  %v17 = vld [vmem:[%s1] sm:$0xff]
  %v18 = vld [vmem:[%s1 + $0x8] sm:$0xff]
  %v19 = vld [vmem:[%s1 + $0x10] sm:$0xff]
  %v20 = vld [vmem:[%s1 + $0x18] sm:$0xff]
  %v21 = vld [vmem:[%s1 + $0x20] sm:$0xff]
  %v22 = vld [vmem:[%s1 + $0x28] sm:$0xff]
  %v23 = vld [vmem:[%s1 + $0x30] sm:$0xff]
  %v24 = vld [vmem:[%s1 + $0x38] sm:$0xff]
  %v25 = vld [vmem:[%s1 + $0x40] sm:$0xff]
  %v26 = vld [vmem:[%s1 + $0x48] sm:$0xff]
  %v27 = vld [vmem:[%s1 + $0x50] sm:$0xff]
  %v28 = vld [vmem:[%s1 + $0x58] sm:$0xff]
  %v29 = vld [vmem:[%s1 + $0x60] sm:$0xff]
  %v30 = vld [vmem:[%s1 + $0x68] sm:$0xff]
  %v31 = vld [vmem:[%s1 + $0x70] sm:$0xff]
  %v32 = vld [vmem:[%s1 + $0x78] sm:$0xff]
  %v33 = vld [vmem:[#allocation2] sm:$0x1]
  %v35 = vlaneseq
  %v36 = vshrl.u32 %v35, 7
  %v37 = vsub.s32 0, %v36
  %v38 = vrot.slane %v33, %v37
  %40 = vmatprep.subr.mxu0 0.0
  %41 = vmatpush1.msra.mxu0 %v32
  %42 = vmatprep.subr.mxu0 0.0
  %43 = vmatpush1.msra.mxu0 %v31
  %44 = vmatprep.subr.mxu0 0.0
  %45 = vmatpush1.msra.mxu0 %v30
  %46 = vmatprep.subr.mxu0 0.0
  %47 = vmatpush1.msra.mxu0 %v29
  %48 = vmatprep.subr.mxu0 0.0
  %49 = vmatpush1.msra.mxu0 %v28
  %50 = vmatprep.subr.mxu0 0.0
  %51 = vmatpush1.msra.mxu0 %v27
  %52 = vmatprep.subr.mxu0 0.0
  %53 = vmatpush1.msra.mxu0 %v26
  %54 = vmatprep.subr.mxu0 0.0
  %55 = vmatpush1.msra.mxu0 %v25
  %56 = vmatprep.subr.mxu0 0.0
  %57 = vmatpush1.msra.mxu0 %v24
  %58 = vmatprep.subr.mxu0 0.0
  %59 = vmatpush1.msra.mxu0 %v23
  %60 = vmatprep.subr.mxu0 0.0
  %61 = vmatpush1.msra.mxu0 %v22
  %62 = vmatprep.subr.mxu0 0.0
  %63 = vmatpush1.msra.mxu0 %v21
  %64 = vmatprep.subr.mxu0 0.0
  %65 = vmatpush1.msra.mxu0 %v20
  %66 = vmatprep.subr.mxu0 0.0
  %67 = vmatpush1.msra.mxu0 %v19
  %68 = vmatprep.subr.mxu0 0.0
  %69 = vmatpush1.msra.mxu0 %v18
  %70 = vmatprep.subr.mxu0 0.0
  %71 = vmatpush1.msra.mxu0 %v17
  %72 = vmatprep.subr.mxu0 0.0
  %73 = vmatpush2.msra.mxu0 0.0
  %74 = vmatprep.subr.mxu0 0.0
  %75 = vmatpush2.msra.mxu0 0.0
  %76 = vmatprep.subr.mxu0 0.0
  %77 = vmatpush2.msra.mxu0 0.0
  %78 = vmatprep.subr.mxu0 0.0
  %79 = vmatpush2.msra.mxu0 0.0
  %80 = vmatprep.subr.mxu0 0.0
  %81 = vmatpush2.msra.mxu0 0.0
  %82 = vmatprep.subr.mxu0 0.0
  %83 = vmatpush2.msra.mxu0 0.0
  %84 = vmatprep.subr.mxu0 0.0
  %85 = vmatpush2.msra.mxu0 0.0
  %86 = vmatprep.subr.mxu0 0.0
  %87 = vmatpush2.msra.mxu0 0.0
  %88 = vmatprep.subr.mxu0 0.0
  %89 = vmatpush2.msra.mxu0 0.0
  %90 = vmatprep.subr.mxu0 0.0
  %91 = vmatpush2.msra.mxu0 0.0
  %92 = vmatprep.subr.mxu0 0.0
  %93 = vmatpush2.msra.mxu0 0.0
  %94 = vmatprep.subr.mxu0 0.0
  %95 = vmatpush2.msra.mxu0 0.0
  %96 = vmatprep.subr.mxu0 0.0
  %97 = vmatpush2.msra.mxu0 0.0
  %98 = vmatprep.subr.mxu0 0.0
  %99 = vmatpush2.msra.mxu0 0.0
  %100 = vmatprep.subr.mxu0 0.0
  %101 = vmatpush2.msra.mxu0 0.0
  %102 = vmatprep.subr.mxu0 0.0
  %103 = vmatpush2.msra.mxu0 0.0
  %104 = vmatprep.mubr.f32.mxu0 0.0
  %105 = vmatmul.mubr.f32.gmra.mxu0 %v16
  %v106 = vpop.f32.mrf.mxu0
  %v107 = vadd.f32 %v38, %v106
  %v108 = vpop.f32.mrf.mxu0
  %109 = vdwg.mxu0
  %v110 = vsub.f32 0.0, %v107
  %v111 = vmul.f32 %v110, 1.442695
  %v112 = vpow.pop %v111
  %v113 = vadd.f32 %v112, 1.0
  %v114 = vrcp.pop %v113
  %v115 = vmul.f32 1.0, %v114
  %vm116 = vcmask 7168
  %117 = vst.msk [vmem:[%s3] sm:$0xff] %vm116, %v115
  // Predicated region
  $region14: #{tpu_custom_call.1} parent=0 // pred_check
    _
  $region15: #{tpu_custom_call.1} parent=0 // pred_check_branch
    %119 = sbr.rel (0) target = $region17
  $region16: #{tpu_custom_call.1} parent=0 // pred_region
    _
  $region17: #{tpu_custom_call.1} parent=0 // pred_fallthru
    _
  // Predicated region
  $region18: #{tpu_custom_call.1} parent=0 // pred_check
    _
  $region19: #{tpu_custom_call.1} parent=0 // pred_check_branch
    %121 = sbr.rel (0) target = $region21
  $region20: #{tpu_custom_call.1} parent=0 // pred_region
    _
  $region21: #{tpu_custom_call.1} parent=0 // pred_fallthru
    _

</llo_original>
